<compile_context>
chip_gen: v5e
topology: v5e:2x2
jax: 0.10.0
libtpu: 0.0.40
codegen_flags: <defaults>
</compile_context>

<pallas_src>
import functools

import jax
import jax.numpy as jnp
from jax.experimental import pallas as pl
from jax.experimental.pallas import tpu as pltpu


def _round_up(x, m):
    return ((x + m - 1) // m) * m


def dan_kernel(idx_ref,       # scalar-prefetch: (B_pad * S,) int32 in SMEM
               table_ref,     # (V_pad, D_pad) f32 embedding table, VMEM resident
               wfc_ref,       # (D_pad, H_pad) f32 fc weight, pre-transposed
               bfc_ref,       # (1, H_pad)   f32
               wout_ref,      # (H_pad, O_pad) f32 out weight, pre-transposed
               bout_ref,      # (1, O_pad)   f32 (padded cols = -1e30)
               o_ref,         # (TB, O_pad)  f32 output slab for this batch tile
               acc_ref,       # VMEM scratch (TB, D_pad) f32 averaged embeddings
               *, tb, seq_len, inv_seq_len):
    t = pl.program_id(0)
    d_pad = table_ref.shape[1]
    tile_base = t * (tb * seq_len)

    # In-kernel embedding gather + mean: for every row of the batch tile, sum
    # the S referenced rows of the VMEM-resident table (dynamic sublane reads,
    # indices read as scalars from SMEM) and store the mean into the
    # accumulator row.  Token loop is a static unroll (S is small); row loop
    # is a fori_loop so large batch tiles do not blow up trace size.
    def row_body(r, carry):
        base = tile_base + r * seq_len
        row_sum = jnp.zeros((1, d_pad), jnp.float32)
        for s in range(seq_len):                       # static unroll over tokens
            word = idx_ref[base + s]
            row_sum = row_sum + table_ref[pl.ds(word, 1), :]
        acc_ref[pl.ds(r, 1), :] = row_sum * inv_seq_len
        return carry

    jax.lax.fori_loop(0, tb, row_body, 0)

    avg = acc_ref[...]                                               # (TB, D_pad)

    # hidden = relu(avg @ W_fc^T + b_fc)   (weights pre-transposed, M = TB)
    hidden = jnp.dot(avg, wfc_ref[...],
                     preferred_element_type=jnp.float32) + bfc_ref[...]
    hidden = jnp.maximum(hidden, 0.0)                                # (TB, H_pad)

    # logits over the padded class axis; padded columns carry a -1e30 bias.
    logits = jnp.dot(hidden, wout_ref[...],
                     preferred_element_type=jnp.float32) + bout_ref[...]

    # log_softmax along dim=1 (padded columns contribute exp(-1e30) = 0).
    m = jnp.max(logits, axis=1, keepdims=True)
    shifted = logits - m
    lse = jnp.log(jnp.sum(jnp.exp(shifted), axis=1, keepdims=True))
    o_ref[...] = shifted - lse


def dan_forward(word_indices, emb, w_fc, b_fc, w_out, b_out, *, batch_tile=8):
    B, S = word_indices.shape
    V, D = emb.shape
    H = w_fc.shape[0]
    O = w_out.shape[0]

    D_pad = _round_up(D, 128)          # lane-dense embedding dim
    H_pad = _round_up(H, 128)          # lane-dense hidden dim
    O_pad = _round_up(O, 128)          # lane-dense class dim
    V_pad = _round_up(V, 8)            # sublane-aligned vocab

    # Resident-table path: keep the whole padded embedding table in VMEM.
    # TODO(synk): add a scalar-prefetch / manual-DMA row-gather fallback for
    # vocabularies too large to keep resident (esp. v7x's 64 MiB VMEM).
    table_bytes = V_pad * D_pad * 4
    assert table_bytes <= 24 * 1024 * 1024, (
        "embedding table too large for the resident-table kernel")

    TB = max(8, _round_up(min(batch_tile, 128), 8))   # batch tile (sublane mult.)
    B_pad = _round_up(B, TB)
    n_tiles = B_pad // TB

    f32 = jnp.float32
    # Free layout plumbing in the wrapper: pad + pre-transpose the weights so
    # the kernel never transposes (no in-kernel XLU work on operands).
    emb_p = jnp.zeros((V_pad, D_pad), f32).at[:V, :D].set(jnp.asarray(emb, f32))
    wfc_t = jnp.zeros((D_pad, H_pad), f32).at[:D, :H].set(jnp.asarray(w_fc, f32).T)
    bfc_p = jnp.zeros((1, H_pad), f32).at[0, :H].set(jnp.asarray(b_fc, f32))
    wout_t = jnp.zeros((H_pad, O_pad), f32).at[:H, :O].set(jnp.asarray(w_out, f32).T)
    bout_p = jnp.full((1, O_pad), -1e30, f32).at[0, :O].set(jnp.asarray(b_out, f32))

    # 1-D flattened indices for SMEM scalar prefetch; padded rows use index 0.
    idx_flat = jnp.zeros((B_pad * S,), jnp.int32)
    idx_flat = idx_flat.at[: B * S].set(word_indices.astype(jnp.int32).reshape(-1))

    kernel = functools.partial(dan_kernel, tb=TB, seq_len=S, inv_seq_len=1.0 / S)

    grid_spec = pltpu.PrefetchScalarGridSpec(
        num_scalar_prefetch=1,                       # word_indices -> SMEM
        grid=(n_tiles,),                             # one step per batch tile
        in_specs=[
            # Resident operands: constant block index -> fetched once, no
            # re-DMA across batch tiles.
            pl.BlockSpec((V_pad, D_pad), lambda t, idx: (0, 0)),
            pl.BlockSpec((D_pad, H_pad), lambda t, idx: (0, 0)),
            pl.BlockSpec((1, H_pad), lambda t, idx: (0, 0)),
            pl.BlockSpec((H_pad, O_pad), lambda t, idx: (0, 0)),
            pl.BlockSpec((1, O_pad), lambda t, idx: (0, 0)),
        ],
        out_specs=pl.BlockSpec((TB, O_pad), lambda t, idx: (t, 0)),
        scratch_shapes=[pltpu.VMEM((TB, D_pad), jnp.float32)],
    )

    out_padded = pl.pallas_call(
        kernel,
        out_shape=jax.ShapeDtypeStruct((B_pad, O_pad), jnp.float32),
        grid_spec=grid_spec,
        compiler_params=pltpu.CompilerParams(
            # Batch-tile axis is independent -> megacore-shardable when >= 2.
            dimension_semantics=("parallel",),
            # Tiny footprint at these shapes; an explicit limit keeps headroom
            # on every generation (incl. v7x's 64 MiB VMEM).  Raise toward
            # ~100 MiB on v5e/v6e for large resident tables / batch tiles.
            vmem_limit_bytes=32 * 1024 * 1024,
        ),
    )(idx_flat, emb_p, wfc_t, bfc_p, wout_t, bout_p)

    return out_padded[:B, :O]


def dan_reference(word_indices, emb, w_fc, b_fc, w_out, b_out):
    # Pure-JAX reference mirroring the PyTorch forward pass.
    gathered = jnp.take(emb, word_indices, axis=0)       # (B, S, D)
    avg = jnp.mean(gathered, axis=1)                     # (B, D)
    hidden = jnp.maximum(avg @ w_fc.T + b_fc, 0.0)       # (B, H)
    logits = hidden @ w_out.T + b_out                    # (B, O)
    return jax.nn.log_softmax(logits, axis=1)


if __name__ == "__main__":
    # Small synthetic shapes consistent with the module's forward pass.
    vocab_size, embedding_dim, hidden_dim, output_dim = 64, 32, 32, 8
    batch, seq = 2, 8

    key = jax.random.PRNGKey(0)
    k_emb, k_wfc, k_bfc, k_wout, k_bout, k_idx = jax.random.split(key, 6)

    # Deterministic "word_embeddings" (row 0 is the padding row; the PyTorch
    # module's copy_ overwrites the zeroed padding row anyway).
    word_embeddings = jax.random.normal(k_emb, (vocab_size, embedding_dim),
                                        dtype=jnp.float32) * 0.1
    w_fc = jax.random.normal(k_wfc, (hidden_dim, embedding_dim),
                             dtype=jnp.float32) * 0.1
    b_fc = jax.random.normal(k_bfc, (hidden_dim,), dtype=jnp.float32) * 0.1
    w_out = jax.random.normal(k_wout, (output_dim, hidden_dim),
                              dtype=jnp.float32) * 0.1
    b_out = jax.random.normal(k_bout, (output_dim,), dtype=jnp.float32) * 0.1

    word_indices = jax.random.randint(k_idx, (batch, seq), 0, vocab_size,
                                      dtype=jnp.int32)

    out = dan_forward(word_indices, word_embeddings, w_fc, b_fc, w_out, b_out)
    out = jax.block_until_ready(out)

    ref = dan_reference(word_indices, word_embeddings, w_fc, b_fc, w_out, b_out)
    assert out.shape == (batch, output_dim)
    assert jnp.allclose(out, ref, atol=1e-4, rtol=1e-4)

    print("KERNEL_OK")
</pallas_src>

<mosaic_0001>
module attributes {stable_mosaic.version = 11 : i64} {
  func.func @dan_kernel(%arg0: i32, %arg1: memref<64xi32, #tpu.memory_space<smem>>, %arg2: memref<64x128xf32, #tpu.memory_space<vmem>>, %arg3: memref<128x128xf32, #tpu.memory_space<vmem>>, %arg4: memref<1x128xf32, #tpu.memory_space<vmem>>, %arg5: memref<128x128xf32, #tpu.memory_space<vmem>>, %arg6: memref<1x128xf32, #tpu.memory_space<vmem>>, %arg7: memref<8x128xf32, #tpu.memory_space<vmem>>, %arg8: memref<8x128xf32, #tpu.memory_space<vmem>>) attributes {dimension_semantics = [#tpu.dimension_semantics<parallel>], iteration_bounds = array<i64: 1>, scalar_prefetch = 1 : i64, scratch_operands = 1 : i64, tpu.core_type = #tpu.core_type<tc>, window_params = [{pipeline_mode = #tpu.pipeline_mode<synchronous>, transform_indices = @transform_0, window_bounds = array<i64: 64, 128>}, {pipeline_mode = #tpu.pipeline_mode<synchronous>, transform_indices = @transform_1, window_bounds = array<i64: 128, 128>}, {pipeline_mode = #tpu.pipeline_mode<synchronous>, transform_indices = @transform_2, window_bounds = array<i64: 1, 128>}, {pipeline_mode = #tpu.pipeline_mode<synchronous>, transform_indices = @transform_3, window_bounds = array<i64: 128, 128>}, {pipeline_mode = #tpu.pipeline_mode<synchronous>, transform_indices = @transform_4, window_bounds = array<i64: 1, 128>}, {transform_indices = @transform_5, window_bounds = array<i64: 8, 128>}]} {
    %c64_i32 = arith.constant 64 : i32
    %0 = arith.muli %arg0, %c64_i32 : i32
    %c0_i32 = arith.constant 0 : i32
    %c8_i32 = arith.constant 8 : i32
    %1 = arith.addi %c0_i32, %c8_i32 : i32
    %c1_i32 = arith.constant 1 : i32
    scf.for %arg9 = %c0_i32 to %1 step %c1_i32  : i32 {
      %c8_i32_16 = arith.constant 8 : i32
      %26 = arith.muli %arg9, %c8_i32_16 : i32
      %27 = arith.addi %0, %26 : i32
      %cst_17 = arith.constant 0.000000e+00 : f32
      %28 = vector.broadcast %cst_17 : f32 to vector<1x128xf32>
      %c0_i32_18 = arith.constant 0 : i32
      %29 = arith.addi %27, %c0_i32_18 : i32
      %30 = arith.index_cast %29 : i32 to index
      %31 = memref.load %arg1[%30] : memref<64xi32, #tpu.memory_space<smem>>
      %32 = arith.index_cast %31 : i32 to index
      %c0_19 = arith.constant 0 : index
      %33 = vector.load %arg2[%32, %c0_19] : memref<64x128xf32, #tpu.memory_space<vmem>>, vector<1x128xf32>
      %34 = arith.addf %28, %33 : vector<1x128xf32>
      %c1_i32_20 = arith.constant 1 : i32
      %35 = arith.addi %27, %c1_i32_20 : i32
      %36 = arith.index_cast %35 : i32 to index
      %37 = memref.load %arg1[%36] : memref<64xi32, #tpu.memory_space<smem>>
      %38 = arith.index_cast %37 : i32 to index
      %c0_21 = arith.constant 0 : index
      %39 = vector.load %arg2[%38, %c0_21] : memref<64x128xf32, #tpu.memory_space<vmem>>, vector<1x128xf32>
      %40 = arith.addf %34, %39 : vector<1x128xf32>
      %c2_i32 = arith.constant 2 : i32
      %41 = arith.addi %27, %c2_i32 : i32
      %42 = arith.index_cast %41 : i32 to index
      %43 = memref.load %arg1[%42] : memref<64xi32, #tpu.memory_space<smem>>
      %44 = arith.index_cast %43 : i32 to index
      %c0_22 = arith.constant 0 : index
      %45 = vector.load %arg2[%44, %c0_22] : memref<64x128xf32, #tpu.memory_space<vmem>>, vector<1x128xf32>
      %46 = arith.addf %40, %45 : vector<1x128xf32>
      %c3_i32 = arith.constant 3 : i32
      %47 = arith.addi %27, %c3_i32 : i32
      %48 = arith.index_cast %47 : i32 to index
      %49 = memref.load %arg1[%48] : memref<64xi32, #tpu.memory_space<smem>>
      %50 = arith.index_cast %49 : i32 to index
      %c0_23 = arith.constant 0 : index
      %51 = vector.load %arg2[%50, %c0_23] : memref<64x128xf32, #tpu.memory_space<vmem>>, vector<1x128xf32>
      %52 = arith.addf %46, %51 : vector<1x128xf32>
      %c4_i32 = arith.constant 4 : i32
      %53 = arith.addi %27, %c4_i32 : i32
      %54 = arith.index_cast %53 : i32 to index
      %55 = memref.load %arg1[%54] : memref<64xi32, #tpu.memory_space<smem>>
      %56 = arith.index_cast %55 : i32 to index
      %c0_24 = arith.constant 0 : index
      %57 = vector.load %arg2[%56, %c0_24] : memref<64x128xf32, #tpu.memory_space<vmem>>, vector<1x128xf32>
      %58 = arith.addf %52, %57 : vector<1x128xf32>
      %c5_i32 = arith.constant 5 : i32
      %59 = arith.addi %27, %c5_i32 : i32
      %60 = arith.index_cast %59 : i32 to index
      %61 = memref.load %arg1[%60] : memref<64xi32, #tpu.memory_space<smem>>
      %62 = arith.index_cast %61 : i32 to index
      %c0_25 = arith.constant 0 : index
      %63 = vector.load %arg2[%62, %c0_25] : memref<64x128xf32, #tpu.memory_space<vmem>>, vector<1x128xf32>
      %64 = arith.addf %58, %63 : vector<1x128xf32>
      %c6_i32 = arith.constant 6 : i32
      %65 = arith.addi %27, %c6_i32 : i32
      %66 = arith.index_cast %65 : i32 to index
      %67 = memref.load %arg1[%66] : memref<64xi32, #tpu.memory_space<smem>>
      %68 = arith.index_cast %67 : i32 to index
      %c0_26 = arith.constant 0 : index
      %69 = vector.load %arg2[%68, %c0_26] : memref<64x128xf32, #tpu.memory_space<vmem>>, vector<1x128xf32>
      %70 = arith.addf %64, %69 : vector<1x128xf32>
      %c7_i32 = arith.constant 7 : i32
      %71 = arith.addi %27, %c7_i32 : i32
      %72 = arith.index_cast %71 : i32 to index
      %73 = memref.load %arg1[%72] : memref<64xi32, #tpu.memory_space<smem>>
      %74 = arith.index_cast %73 : i32 to index
      %c0_27 = arith.constant 0 : index
      %75 = vector.load %arg2[%74, %c0_27] : memref<64x128xf32, #tpu.memory_space<vmem>>, vector<1x128xf32>
      %76 = arith.addf %70, %75 : vector<1x128xf32>
      %cst_28 = arith.constant 1.250000e-01 : f32
      %77 = vector.broadcast %cst_28 : f32 to vector<1x128xf32>
      %78 = arith.mulf %76, %77 : vector<1x128xf32>
      %79 = arith.index_cast %arg9 : i32 to index
      %c0_29 = arith.constant 0 : index
      %80 = vector.load %arg8[%79, %c0_29] : memref<8x128xf32, #tpu.memory_space<vmem>>, vector<1x128xf32>
      tpu.vector_store %arg8[%79, %c0_29], %78 {strides = array<i32>} : memref<8x128xf32, #tpu.memory_space<vmem>>, vector<1x128xf32>,
    }
    %c8_i32_0 = arith.constant 8 : i32
    %c0 = arith.constant 0 : index
    %c0_1 = arith.constant 0 : index
    %2 = vector.load %arg8[%c0, %c0_1] : memref<8x128xf32, #tpu.memory_space<vmem>>, vector<8x128xf32>
    %c0_2 = arith.constant 0 : index
    %c0_3 = arith.constant 0 : index
    %3 = vector.load %arg3[%c0_2, %c0_3] : memref<128x128xf32, #tpu.memory_space<vmem>>, vector<128x128xf32>
    %cst = arith.constant dense<0.000000e+00> : vector<8x128xf32>
    %4 = tpu.matmul %2, %3, %cst {dimension_numbers = #tpu.dot_dimension_numbers<[1], [0], [0], [1], [0, 0, 1, 1], [], []>} : vector<8x128xf32>, vector<128x128xf32>, vector<8x128xf32> -> vector<8x128xf32>
    %c0_4 = arith.constant 0 : index
    %c0_5 = arith.constant 0 : index
    %5 = vector.load %arg4[%c0_4, %c0_5] : memref<1x128xf32, #tpu.memory_space<vmem>>, vector<1x128xf32>
    %6 = vector.broadcast %5 : vector<1x128xf32> to vector<8x128xf32>
    %7 = arith.addf %4, %6 : vector<8x128xf32>
    %cst_6 = arith.constant 0.000000e+00 : f32
    %8 = vector.broadcast %cst_6 : f32 to vector<8x128xf32>
    %9 = arith.maximumf %7, %8 : vector<8x128xf32>
    %c0_7 = arith.constant 0 : index
    %c0_8 = arith.constant 0 : index
    %10 = vector.load %arg5[%c0_7, %c0_8] : memref<128x128xf32, #tpu.memory_space<vmem>>, vector<128x128xf32>
    %cst_9 = arith.constant dense<0.000000e+00> : vector<8x128xf32>
    %11 = tpu.matmul %9, %10, %cst_9 {dimension_numbers = #tpu.dot_dimension_numbers<[1], [0], [0], [1], [0, 0, 1, 1], [], []>} : vector<8x128xf32>, vector<128x128xf32>, vector<8x128xf32> -> vector<8x128xf32>
    %c0_10 = arith.constant 0 : index
    %c0_11 = arith.constant 0 : index
    %12 = vector.load %arg6[%c0_10, %c0_11] : memref<1x128xf32, #tpu.memory_space<vmem>>, vector<1x128xf32>
    %13 = vector.broadcast %12 : vector<1x128xf32> to vector<8x128xf32>
    %14 = arith.addf %11, %13 : vector<8x128xf32>
    %cst_12 = arith.constant dense<0xFF800000> : vector<8xf32>
    %15 = vector.multi_reduction <maximumf>, %14, %cst_12 [1] : vector<8x128xf32> to vector<8xf32>
    %16 = vector.shape_cast %15 : vector<8xf32> to vector<8x1xf32>
    %17 = vector.broadcast %16 : vector<8x1xf32> to vector<8x128xf32>
    %18 = arith.subf %14, %17 : vector<8x128xf32>
    %19 = math.exp %18 : vector<8x128xf32>
    %cst_13 = arith.constant dense<0.000000e+00> : vector<8xf32>
    %20 = vector.multi_reduction <add>, %19, %cst_13 [1] : vector<8x128xf32> to vector<8xf32>
    %21 = vector.shape_cast %20 : vector<8xf32> to vector<8x1xf32>
    %22 = math.log %21 : vector<8x1xf32>
    %23 = vector.broadcast %22 : vector<8x1xf32> to vector<8x128xf32>
    %24 = arith.subf %18, %23 : vector<8x128xf32>
    %c0_14 = arith.constant 0 : index
    %c0_15 = arith.constant 0 : index
    %25 = vector.load %arg7[%c0_14, %c0_15] : memref<8x128xf32, #tpu.memory_space<vmem>>, vector<8x128xf32>
    tpu.vector_store %arg7[%c0_14, %c0_15], %24 {strides = array<i32>} : memref<8x128xf32, #tpu.memory_space<vmem>>, vector<8x128xf32>,
    return
  }
  func.func @transform_0(%arg0: i32, %arg1: memref<64xi32, #tpu.memory_space<smem>>) -> (i32, i32) {
    %c0_i32 = arith.constant 0 : i32
    %c0_i32_0 = arith.constant 0 : i32
    %c0_i32_1 = arith.constant 0 : i32
    return %c0_i32, %c0_i32_0 : i32, i32
  }
  func.func @transform_1(%arg0: i32, %arg1: memref<64xi32, #tpu.memory_space<smem>>) -> (i32, i32) {
    %c0_i32 = arith.constant 0 : i32
    %c0_i32_0 = arith.constant 0 : i32
    %c0_i32_1 = arith.constant 0 : i32
    return %c0_i32, %c0_i32_0 : i32, i32
  }
  func.func @transform_2(%arg0: i32, %arg1: memref<64xi32, #tpu.memory_space<smem>>) -> (i32, i32) {
    %c0_i32 = arith.constant 0 : i32
    %c0_i32_0 = arith.constant 0 : i32
    %c0_i32_1 = arith.constant 0 : i32
    return %c0_i32, %c0_i32_0 : i32, i32
  }
  func.func @transform_3(%arg0: i32, %arg1: memref<64xi32, #tpu.memory_space<smem>>) -> (i32, i32) {
    %c0_i32 = arith.constant 0 : i32
    %c0_i32_0 = arith.constant 0 : i32
    %c0_i32_1 = arith.constant 0 : i32
    return %c0_i32, %c0_i32_0 : i32, i32
  }
  func.func @transform_4(%arg0: i32, %arg1: memref<64xi32, #tpu.memory_space<smem>>) -> (i32, i32) {
    %c0_i32 = arith.constant 0 : i32
    %c0_i32_0 = arith.constant 0 : i32
    %c0_i32_1 = arith.constant 0 : i32
    return %c0_i32, %c0_i32_0 : i32, i32
  }
  func.func @transform_5(%arg0: i32, %arg1: memref<64xi32, #tpu.memory_space<smem>>) -> (i32, i32) {
    %c0_i32 = arith.constant 0 : i32
    %c0_i32_0 = arith.constant 0 : i32
    return %arg0, %c0_i32 : i32, i32
  }
}

</mosaic_0001>

<llo_original>
// kernel: tpu_custom_call.1
$region0: #{tpu_custom_call.1}
  #allocation0 [shape = 'u32[]', space=smem, size = 0x4, offset = 0x4, fixed_abs, tag = 'smem constant byte address 0x4 - core index']
  #allocation1 [shape = 'u32[72,128]{1,0:T(1,128)}', space=vmem, size = 0x9000, scoped, tag = 'internal scratch']
  #allocation2 [shape = 'f32[8,128]{1,0:T(8,128)}', space=vmem, size = 0x1000, scoped, tag = 'scratch operand']
  #allocation3 [shape = 's32[1]{0}', space=sflag, size = 0x4, scoped, tag = 'scoped memory for tpu_custom_call.1']
  #allocation4 [shape = 'u8[512]{0}', space=smem, size = 0x200, scoped, tag = 'prefetched SMEM operand 0']
  %s0 = inlined_call_operand.hbm [shape: s32[64], index: 0, kind: input, shape index: {}]
  %s1 = inlined_call_operand.hbm [shape: f32[64,128], index: 1, kind: input, shape index: {}]
  %s2 = inlined_call_operand.hbm [shape: f32[128,128], index: 2, kind: input, shape index: {}]
  %s3 = inlined_call_operand.vmem [shape: f32[1,128], index: 3, kind: input, shape index: {}]
  %s4 = inlined_call_operand.hbm [shape: f32[128,128], index: 4, kind: input, shape index: {}]
  %s5 = inlined_call_operand.vmem [shape: f32[1,128], index: 5, kind: input, shape index: {}]
  %s6 = inlined_call_operand.hbm [shape: f32[8,128], index: 6, kind: output, shape index: {}]
  %s7 = sld [smem:[#allocation0]]
  $region49: #{tpu_custom_call.1} parent=0
    _
  %s9 = ssub.s32 1, %s7
  %s10 = scalar_select 0, %s9, %s7
  %s12 = sshll.u32 %s0, 4
  %s13 = int_to_ptr.hbm [resolvable:$true] %s12
  %15 = dma.hbm_to_smem %s13, 16, [#allocation4], [#allocation3]
  %17 = dma.done [#allocation3], 16
  %18 = sfence
  $region1: #{tpu_custom_call.1} parent=0
    #allocation5 [shape = 'u8[32768]{0}', space=vmem, size = 0x8000, scoped, tag = 'input window, operand 1, single buffered']
    #allocation6 [shape = 's32[1]{0}', space=sflag, size = 0x4, scoped, tag = 'scoped memory for tpu_custom_call.1']
    #allocation7 [shape = 's32[1]{0}', space=sflag, size = 0x4, scoped, tag = 'scoped memory for tpu_custom_call.1']
    #allocation8 [shape = 'u8[65536]{0}', space=vmem, size = 0x10000, scoped, tag = 'input window, operand 2, single buffered']
    #allocation9 [shape = 's32[1]{0}', space=sflag, size = 0x4, scoped, tag = 'scoped memory for tpu_custom_call.1']
    #allocation10 [shape = 'u8[65536]{0}', space=vmem, size = 0x10000, scoped, tag = 'input window, operand 4, single buffered']
    #allocation11 [shape = 'u8[4096]{0}', space=vmem, size = 0x1000, scoped, tag = 'output window, operand 0, single buffered']
    %19 = vsyncpa [#allocation6], 0
    %20 = vsyncpa [#allocation9], 0
    %21 = vsyncpa [#allocation7], 0
    // Predicated region
    $region2: #{tpu_custom_call.1} parent=1 // pred_check
      _
    $region3: #{tpu_custom_call.1} parent=1 // pred_check_branch
      %23 = sbr.rel (0) target = $region5
    $region4: #{tpu_custom_call.1} parent=1 // pred_region
      %25 = vsyncadd [#allocation6], 0
      %s26 = sshll.u32 %s1, 4
      %s27 = int_to_ptr.hbm [resolvable:$true] %s26
      %s28 = sshll.u32 [#allocation5], 4
      %s29 = int_to_ptr.vmem [resolvable:$true] %s28
      %34 = dma.hbm_to_vmem [thread:$0]  %s27, 1024, %s29, [#allocation6], 128, 128, 8
    $region5: #{tpu_custom_call.1} parent=1 // pred_fallthru
      _
    // Predicated region
    $region6: #{tpu_custom_call.1} parent=1 // pred_check
      _
    $region7: #{tpu_custom_call.1} parent=1 // pred_check_branch
      %36 = sbr.rel (0) target = $region9
    $region8: #{tpu_custom_call.1} parent=1 // pred_region
      %38 = vsyncadd [#allocation9], 0
      %s39 = sshll.u32 %s2, 4
      %s40 = int_to_ptr.hbm [resolvable:$true] %s39
      %s41 = sshll.u32 [#allocation8], 4
      %s42 = int_to_ptr.vmem [resolvable:$true] %s41
      %47 = dma.hbm_to_vmem [thread:$0]  %s40, 2048, %s42, [#allocation9], 128, 128, 8
    $region9: #{tpu_custom_call.1} parent=1 // pred_fallthru
      _
    // Predicated region
    $region10: #{tpu_custom_call.1} parent=1 // pred_check
      _
    $region11: #{tpu_custom_call.1} parent=1 // pred_check_branch
      %49 = sbr.rel (0) target = $region13
    $region12: #{tpu_custom_call.1} parent=1 // pred_region
      _
    $region13: #{tpu_custom_call.1} parent=1 // pred_fallthru
      _
    // Predicated region
    $region14: #{tpu_custom_call.1} parent=1 // pred_check
      _
    $region15: #{tpu_custom_call.1} parent=1 // pred_check_branch
      %51 = sbr.rel (0) target = $region17
    $region16: #{tpu_custom_call.1} parent=1 // pred_region
      %53 = vsyncadd [#allocation9], 0
      %s54 = sshll.u32 %s4, 4
      %s55 = int_to_ptr.hbm [resolvable:$true] %s54
      %s56 = sshll.u32 [#allocation10], 4
      %s57 = int_to_ptr.vmem [resolvable:$true] %s56
      %62 = dma.hbm_to_vmem [thread:$0]  %s55, 2048, %s57, [#allocation9], 128, 128, 8
    $region17: #{tpu_custom_call.1} parent=1 // pred_fallthru
      _
    // Predicated region
    $region18: #{tpu_custom_call.1} parent=1 // pred_check
      _
    $region19: #{tpu_custom_call.1} parent=1 // pred_check_branch
      %64 = sbr.rel (0) target = $region21
    $region20: #{tpu_custom_call.1} parent=1 // pred_region
      _
    $region21: #{tpu_custom_call.1} parent=1 // pred_fallthru
      _
    // Predicated region
    $region22: #{tpu_custom_call.1} parent=1 // pred_check
      _
    $region23: #{tpu_custom_call.1} parent=1 // pred_check_branch
      %66 = sbr.rel (0) target = $region25
    $region24: #{tpu_custom_call.1} parent=1 // pred_region
      %68 = dma.done [#allocation6], 1024
    $region25: #{tpu_custom_call.1} parent=1 // pred_fallthru
      _
    // Predicated region
    $region26: #{tpu_custom_call.1} parent=1 // pred_check
      _
    $region27: #{tpu_custom_call.1} parent=1 // pred_check_branch
      %70 = sbr.rel (0) target = $region29
    $region28: #{tpu_custom_call.1} parent=1 // pred_region
      %72 = dma.done [#allocation9], 2048
    $region29: #{tpu_custom_call.1} parent=1 // pred_fallthru
      _
    // Predicated region
    $region30: #{tpu_custom_call.1} parent=1 // pred_check
      _
    $region31: #{tpu_custom_call.1} parent=1 // pred_check_branch
      %74 = sbr.rel (0) target = $region33
    $region32: #{tpu_custom_call.1} parent=1 // pred_region
      %76 = dma.done [#allocation9], 2048
    $region33: #{tpu_custom_call.1} parent=1 // pred_fallthru
      _
    %s77 = smul.u32 0, 64
    loop: start=0, step=1, limit=8
    $region34: #{tpu_custom_call.1} parent=1 // loop_pre_header
      _
    $region35: #{tpu_custom_call.1} parent=1 // loop_header
      %s79 = sphi 0, %s83
      %p80 = scmp.ge.s32.totalorder %s79, 8
    $region36: #{tpu_custom_call.1} parent=1 // loop_header_branch
      %82 = sbr.rel (%p80) target = $region40
    $region37: #{tpu_custom_call.1} parent=1 // loop_body
      %s84 = smul.u32 %s79, 8
      %s85 = sadd.s32 %s77, %s84
      %s86 = sld [smem:[#allocation4 + %s85]]
      %s87 = scalar_lea.vmem [#allocation5], %s86
      %v88 = vld [vmem:[%s87] sm:$0x1]
      %v89 = vadd.f32 %v88, 0.0
      %s90 = sadd.s32 %s85, 1
      %s91 = sld [smem:[#allocation4 + %s90]]
      %s92 = scalar_lea.vmem [#allocation5], %s91
      %v93 = vld [vmem:[%s92] sm:$0x1]
      %v94 = vadd.f32 %v89, %v93
      %s95 = sadd.s32 %s85, 2
      %s96 = sld [smem:[#allocation4 + %s95]]
      %s97 = scalar_lea.vmem [#allocation5], %s96
      %v98 = vld [vmem:[%s97] sm:$0x1]
      %v99 = vadd.f32 %v94, %v98
      %s100 = sadd.s32 %s85, 3
      %s101 = sld [smem:[#allocation4 + %s100]]
      %s102 = scalar_lea.vmem [#allocation5], %s101
      %v103 = vld [vmem:[%s102] sm:$0x1]
      %v104 = vadd.f32 %v99, %v103
      %s105 = sadd.s32 %s85, 4
      %s106 = sld [smem:[#allocation4 + %s105]]
      %s107 = scalar_lea.vmem [#allocation5], %s106
      %v108 = vld [vmem:[%s107] sm:$0x1]
      %v109 = vadd.f32 %v104, %v108
      %s110 = sadd.s32 %s85, 5
      %s111 = sld [smem:[#allocation4 + %s110]]
      %s112 = scalar_lea.vmem [#allocation5], %s111
      %v113 = vld [vmem:[%s112] sm:$0x1]
      %v114 = vadd.f32 %v109, %v113
      %s115 = sadd.s32 %s85, 6
      %s116 = sld [smem:[#allocation4 + %s115]]
      %s117 = scalar_lea.vmem [#allocation5], %s116
      %v118 = vld [vmem:[%s117] sm:$0x1]
      %v119 = vadd.f32 %v114, %v118
      %s120 = sadd.s32 %s85, 7
      %s121 = sld [smem:[#allocation4 + %s120]]
      %s122 = scalar_lea.vmem [#allocation5], %s121
      %v123 = vld [vmem:[%s122] sm:$0x1]
      %v124 = vadd.f32 %v119, %v123
      %v125 = vmul.f32 %v124, 0.125
      %s126 = scalar_lea.vmem [#allocation2], %s79
      %127 = vst [vmem:[%s126] sm:$0x1] %v125
    $region38: #{tpu_custom_call.1} parent=1 // loop_footer
      %s83 = sadd.s32 1, %s79
    $region39: #{tpu_custom_call.1} parent=1 // loop_footer_branch
      %78 = sbr.rel target = $region35
    $region40: #{tpu_custom_call.1} parent=1 // loop_exit
      _
    %v128 = vld [vmem:[#allocation2] sm:$0xff]
    %v129 = vld [vmem:[#allocation8] sm:$0xff]
    %v130 = vld [vmem:[#allocation8 + $0x8] sm:$0xff]
    %v131 = vld [vmem:[#allocation8 + $0x10] sm:$0xff]
    %v132 = vld [vmem:[#allocation8 + $0x18] sm:$0xff]
    %v133 = vld [vmem:[#allocation8 + $0x20] sm:$0xff]
    %v134 = vld [vmem:[#allocation8 + $0x28] sm:$0xff]
    %v135 = vld [vmem:[#allocation8 + $0x30] sm:$0xff]
    %v136 = vld [vmem:[#allocation8 + $0x38] sm:$0xff]
    %v137 = vld [vmem:[#allocation8 + $0x40] sm:$0xff]
    %v138 = vld [vmem:[#allocation8 + $0x48] sm:$0xff]
    %v139 = vld [vmem:[#allocation8 + $0x50] sm:$0xff]
    %v140 = vld [vmem:[#allocation8 + $0x58] sm:$0xff]
    %v141 = vld [vmem:[#allocation8 + $0x60] sm:$0xff]
    %v142 = vld [vmem:[#allocation8 + $0x68] sm:$0xff]
    %v143 = vld [vmem:[#allocation8 + $0x70] sm:$0xff]
    %v144 = vld [vmem:[#allocation8 + $0x78] sm:$0xff]
    %v145 = vld [vmem:[%s3] sm:$0x1]
    %v147 = vperm.slane %v145, 0
    %149 = vmatpush.msra.mxu0 %v144
    %150 = vmatpush.msra.mxu0 %v143
    %151 = vmatpush.msra.mxu0 %v142
    %152 = vmatpush.msra.mxu0 %v141
    %153 = vmatpush.msra.mxu0 %v140
    %154 = vmatpush.msra.mxu0 %v139
    %155 = vmatpush.msra.mxu0 %v138
    %156 = vmatpush.msra.mxu0 %v137
    %157 = vmatpush.msra.mxu0 %v136
    %158 = vmatpush.msra.mxu0 %v135
    %159 = vmatpush.msra.mxu0 %v134
    %160 = vmatpush.msra.mxu0 %v133
    %161 = vmatpush.msra.mxu0 %v132
    %162 = vmatpush.msra.mxu0 %v131
    %163 = vmatpush.msra.mxu0 %v130
    %164 = vmatpush.msra.mxu0 %v129
    %165 = vmatmul.f32.gmra.mxu0 %v128
    %v166 = vpop.f32.mrf.mxu0
    %v167 = vadd.f32 %v147, %v166
    %168 = vdwg.mxu0
    %v169 = vmax.f32 %v167, 0.0
    %v170 = vld [vmem:[#allocation10] sm:$0xff]
    %v171 = vld [vmem:[#allocation10 + $0x8] sm:$0xff]
    %v172 = vld [vmem:[#allocation10 + $0x10] sm:$0xff]
    %v173 = vld [vmem:[#allocation10 + $0x18] sm:$0xff]
    %v174 = vld [vmem:[#allocation10 + $0x20] sm:$0xff]
    %v175 = vld [vmem:[#allocation10 + $0x28] sm:$0xff]
    %v176 = vld [vmem:[#allocation10 + $0x30] sm:$0xff]
    %v177 = vld [vmem:[#allocation10 + $0x38] sm:$0xff]
    %v178 = vld [vmem:[#allocation10 + $0x40] sm:$0xff]
    %v179 = vld [vmem:[#allocation10 + $0x48] sm:$0xff]
    %v180 = vld [vmem:[#allocation10 + $0x50] sm:$0xff]
    %v181 = vld [vmem:[#allocation10 + $0x58] sm:$0xff]
    %v182 = vld [vmem:[#allocation10 + $0x60] sm:$0xff]
    %v183 = vld [vmem:[#allocation10 + $0x68] sm:$0xff]
    %v184 = vld [vmem:[#allocation10 + $0x70] sm:$0xff]
    %v185 = vld [vmem:[#allocation10 + $0x78] sm:$0xff]
    %v186 = vld [vmem:[%s5] sm:$0x1]
    %v188 = vperm.slane %v186, 0
    %190 = vmatpush.msra.mxu0 %v185
    %191 = vmatpush.msra.mxu0 %v184
    %192 = vmatpush.msra.mxu0 %v183
    %193 = vmatpush.msra.mxu0 %v182
    %194 = vmatpush.msra.mxu0 %v181
    %195 = vmatpush.msra.mxu0 %v180
    %196 = vmatpush.msra.mxu0 %v179
    %197 = vmatpush.msra.mxu0 %v178
    %198 = vmatpush.msra.mxu0 %v177
    %199 = vmatpush.msra.mxu0 %v176
    %200 = vmatpush.msra.mxu0 %v175
    %201 = vmatpush.msra.mxu0 %v174
    %202 = vmatpush.msra.mxu0 %v173
    %203 = vmatpush.msra.mxu0 %v172
    %204 = vmatpush.msra.mxu0 %v171
    %205 = vmatpush.msra.mxu0 %v170
    %206 = vmatmul.f32.gmra.mxu0 %v169
    %v207 = vpop.f32.mrf.mxu0
    %v208 = vadd.f32 %v188, %v207
    %209 = vdwg.mxu0
    %210 = vmax.xlane.f32.xlu0 %v208
    %v211 = vpop.xlane.xlu0 %210
    %v212 = vsub.f32 %v208, %v211
    %v213 = vmul.f32 %v212, 1.442695
    %v214 = vpow.pop %v213
    %215 = vadd.xlane.f32.xlu0 %v214
    %v216 = vpop.xlane.xlu0 %215
    %v217 = vlog2.pop %v216
    %v218 = vmul.f32 %v217, 0.6931472
    %v219 = vsub.f32 %v212, %v218
    %220 = vst [vmem:[#allocation11] sm:$0xff] %v219
    // Predicated region
    $region41: #{tpu_custom_call.1} parent=1 // pred_check
      _
    $region42: #{tpu_custom_call.1} parent=1 // pred_check_branch
      %222 = sbr.rel (0) target = $region44
    $region43: #{tpu_custom_call.1} parent=1 // pred_region
      %224 = vsyncadd [#allocation7], 0
      %s226 = sshll.u32 [#allocation11], 4
      %s227 = int_to_ptr.vmem [resolvable:$true] %s226
      %s228 = sshll.u32 %s6, 4
      %s229 = int_to_ptr.hbm [resolvable:$true] %s228
      %231 = dma.vmem_to_hbm [thread:$0]  %s227, 128, %s229, [#allocation7]
    $region44: #{tpu_custom_call.1} parent=1 // pred_fallthru
      _
    // Predicated region
    $region45: #{tpu_custom_call.1} parent=1 // pred_check
      _
    $region46: #{tpu_custom_call.1} parent=1 // pred_check_branch
      %233 = sbr.rel (0) target = $region48
    $region47: #{tpu_custom_call.1} parent=1 // pred_region
      %235 = dma.done [#allocation7], 128
    $region48: #{tpu_custom_call.1} parent=1 // pred_fallthru
      _
    %236 = vsyncpa [#allocation6], 1
    %237 = vsyncpa [#allocation9], 1
    %238 = vsyncpa [#allocation7], 1

</llo_original>
